<compile_context>
chip_gen: v7x
topology: tpu7x:2x2x1
jax: 0.10.0
libtpu: 0.0.40
codegen_flags: <defaults>
</compile_context>

<pallas_src>
import functools

import jax
import jax.numpy as jnp
from jax.experimental import pallas as pl
from jax.experimental.pallas import tpu as pltpu

BN_EPS = 1e-5
LRELU_SLOPE = 0.1


def _round_up(x, m):
    return ((x + m - 1) // m) * m


def _phys_vmem_bytes():
    """Physical VMEM capacity; conservative fallback if the query is unavailable."""
    try:
        info = pltpu.get_tpu_info()
        v = getattr(info, "vmem_capacity_bytes", None)
        if v:
            return int(v)
    except Exception:
        pass
    return 64 << 20   # v7x per-core VMEM (smallest of the three generations)


def _disc_kernel(x_ref, w1_ref, par_ref, out_ref, acc_ref, *,
                 tk, real_b, x_resident):
    # Grid = (nH parallel, nK arbitrary).
    # x_ref  : [B_pad, K_pad] bf16 (resident)  OR  [B_pad, tk] bf16 (K-tiled)
    # w1_ref : [tk, tH]       bf16  (K,H tile of the first-layer weight)
    # par_ref: [8,  tH]       f32   (row 0: gamma, row 1: beta, row 2: w2)
    # out_ref: [1, B_pad, 1]  f32   (partial score for this H tile)
    # acc_ref: [B_pad, tH]    f32   VMEM scratch (resident h = x @ w1, this H tile)
    k = pl.program_id(1)
    nk = pl.num_programs(1)

    @pl.when(k == 0)
    def _init():
        acc_ref[...] = jnp.zeros_like(acc_ref)

    if x_resident:
        off = pl.multiple_of(k * tk, 128)
        x_blk = x_ref[:, pl.ds(off, tk)]
    else:
        x_blk = x_ref[...]

    # --- Linear 1 (no bias): K-tiled MXU matmul, f32 accumulation ---
    acc_ref[...] += jnp.dot(x_blk, w1_ref[...],
                            preferred_element_type=jnp.float32)

    @pl.when(k == nk - 1)
    def _finalize():
        h = acc_ref[...]                               # [B_pad, tH] f32
        gamma = par_ref[0:1, :]
        beta = par_ref[1:2, :]
        w2_row = par_ref[2:3, :]

        inv_b = 1.0 / real_b
        # --- BatchNorm1d (training statistics), two-pass variance.  Padded
        #     batch rows of h are exactly zero (zero-padded x, no bias), so the
        #     sums only need the true-batch divisor; the centered sum masks the
        #     padded rows explicitly.
        mean = jnp.sum(h, axis=0, keepdims=True) * inv_b
        d = h - mean
        if h.shape[0] != real_b:
            rows = jax.lax.broadcasted_iota(jnp.int32, h.shape, 0)
            d = jnp.where(rows < real_b, d, 0.0)
        var = jnp.sum(d * d, axis=0, keepdims=True) * inv_b
        hn = (h - mean) * jax.lax.rsqrt(var + BN_EPS)
        hn = hn * gamma + beta

        # --- LeakyReLU(0.1) ---
        act = jnp.where(hn > 0, hn, LRELU_SLOPE * hn)

        # --- Linear 2 (this H tile's contribution): VPU mul + lane reduction ---
        partial = jnp.sum(act * w2_row, axis=1, keepdims=True)   # [B_pad, 1]
        out_ref[...] = partial.reshape(out_ref.shape).astype(out_ref.dtype)


def prepare_params(w1, gamma, beta, w2, b2):
    """One-time packing of the Discriminator parameters into the padded,
    MXU-friendly layout the kernel consumes.  Do NOT redo this per call."""
    d_in, hid = w1.shape
    K_pad = _round_up(d_in, 128)
    H_pad = _round_up(hid, 128)

    w1_p = jnp.pad(w1.astype(jnp.float32),
                   ((0, K_pad - d_in), (0, H_pad - hid))).astype(jnp.bfloat16)

    # Fused [8, H_pad] f32 slab: one constant block instead of three.
    slab = jnp.zeros((8, H_pad), jnp.float32)
    slab = slab.at[0, :hid].set(jnp.ravel(gamma).astype(jnp.float32))
    slab = slab.at[1, :hid].set(jnp.ravel(beta).astype(jnp.float32))
    slab = slab.at[2, :hid].set(jnp.ravel(w2).astype(jnp.float32))

    b2_s = jnp.asarray(b2, jnp.float32).reshape(())
    return w1_p, slab, b2_s


@jax.jit
def discriminator_forward(reps, w1_p, slab, b2):
    """reps: [B, n_topic + bow_dim] -> score: [B, 1] (f32).

    w1_p / slab / b2 must come from `prepare_params` (padded bf16 / f32 layouts).
    """
    B, d_in = reps.shape
    K_pad, H_pad = w1_p.shape
    assert K_pad == _round_up(d_in, 128), "w1_p padding does not match reps"
    assert slab.shape == (8, H_pad), "param slab shape mismatch"

    B_pad = max(16, _round_up(B, 16))          # bf16 sublane packing

    # --- H tiling (parallel axis: shards w1 stream + epilogue across cores) ---
    tH = H_pad
    if H_pad > 1024:
        nh_blocks = H_pad // 128
        for m in range(nh_blocks, 0, -1):
            cand = m * 128
            if cand <= 1024 and nh_blocks % m == 0:
                tH = cand
                break
    nH = H_pad // tH

    # --- generation-aware VMEM budgeting & K tiling ---
    phys = _phys_vmem_bytes()
    usable = min(int(0.6 * phys), phys - (16 << 20))

    fixed = (B_pad * tH * 4                      # resident f32 accumulator
             + 2 * 8 * tH * 4                    # fused param slab (2 buffers)
             + 2 * max(B_pad, 8) * 128 * 4)      # output tile (padded, 2 buffers)

    x_resident_bytes = 2 * B_pad * K_pad * 2     # 2 buffers x bf16 full x
    x_resident = x_resident_bytes <= min(16 << 20, max(usable // 3, 0))

    budget = usable - fixed - (x_resident_bytes if x_resident else 0)
    nk_blocks = K_pad // 128
    tk = 128
    for m in range(nk_blocks, 0, -1):            # largest divisor first (nk=1 if it fits)
        cand = m * 128
        if cand > 2048 and m != nk_blocks:       # cap streamed tiles at 2048
            continue
        if nk_blocks % m != 0:
            continue
        per_step = 4 * cand * tH + (0 if x_resident else 4 * B_pad * cand)
        if per_step <= budget:
            tk = cand
            break
    nk = K_pad // tk

    est = (fixed + (x_resident_bytes if x_resident else 4 * B_pad * tk)
           + 4 * tk * tH)
    vmem_limit = int(min(phys - (8 << 20), max(est + (8 << 20), 32 << 20)))

    # Per-call work on the (small) activations only; weights were packed at init.
    x_p = jnp.pad(reps.astype(jnp.float32),
                  ((0, B_pad - B), (0, K_pad - d_in))).astype(jnp.bfloat16)

    if x_resident:
        x_spec = pl.BlockSpec((B_pad, K_pad), lambda h, k: (0, 0))
    else:
        x_spec = pl.BlockSpec((B_pad, tk), lambda h, k: (0, k))

    kernel = functools.partial(_disc_kernel, tk=tk, real_b=B,
                               x_resident=x_resident)

    cost = pl.CostEstimate(
        flops=2 * B_pad * K_pad * H_pad + 10 * B_pad * H_pad,
        transcendentals=H_pad,
        bytes_accessed=(B_pad * K_pad + K_pad * H_pad) * 2
                       + 8 * H_pad * 4 + nH * B_pad * 4,
    )

    parts = pl.pallas_call(
        kernel,
        out_shape=jax.ShapeDtypeStruct((nH, B_pad, 1), jnp.float32),
        grid=(nH, nk),
        in_specs=[
            x_spec,                                        # x: resident or K-tiled
            pl.BlockSpec((tk, tH), lambda h, k: (k, h)),   # w1: (K, H) tiles
            pl.BlockSpec((8, tH), lambda h, k: (0, h)),    # gamma/beta/w2 slab
        ],
        out_specs=pl.BlockSpec((1, B_pad, 1), lambda h, k: (h, 0, 0)),
        scratch_shapes=[pltpu.VMEM((B_pad, tH), jnp.float32)],
        compiler_params=pltpu.CompilerParams(
            dimension_semantics=("parallel", "arbitrary"),   # H parallel, K reduction
            vmem_limit_bytes=vmem_limit,
        ),
        cost_estimate=cost,
    )(x_p, w1_p, slab)

    score = jnp.sum(parts, axis=0)[:B] + b2
    return score


if __name__ == "__main__":
    bow_dim, hid_dim, n_topic = 32, 32, 8
    batch = 8
    d_in = n_topic + bow_dim

    key = jax.random.PRNGKey(0)
    k1, k2, k3, kx = jax.random.split(key, 4)

    # Deterministic synthetic init (uniform, PyTorch-like 1/sqrt(fan_in) scale).
    w1 = jax.random.uniform(k1, (d_in, hid_dim), jnp.float32,
                            minval=-1.0, maxval=1.0) / jnp.sqrt(d_in)
    gamma = jnp.ones((hid_dim,), jnp.float32)       # BatchNorm weight
    beta = jnp.zeros((hid_dim,), jnp.float32)       # BatchNorm bias
    w2 = jax.random.uniform(k2, (hid_dim, 1), jnp.float32,
                            minval=-1.0, maxval=1.0) / jnp.sqrt(hid_dim)
    b2 = jax.random.uniform(k3, (1,), jnp.float32,
                            minval=-1.0, maxval=1.0) / jnp.sqrt(hid_dim)
    reps = jax.random.normal(kx, (batch, d_in), jnp.float32)

    # One-time parameter packing (padded bf16 w1 + fused f32 gamma/beta/w2 slab).
    w1_p, slab, b2_s = prepare_params(w1, gamma, beta, w2, b2)

    score = discriminator_forward(reps, w1_p, slab, b2_s)
    jax.block_until_ready(score)

    # Pure-JAX reference (same bf16 rounding of the matmul inputs).
    xf = reps.astype(jnp.bfloat16).astype(jnp.float32)
    w1f = w1.astype(jnp.bfloat16).astype(jnp.float32)
    h = xf @ w1f
    mean = h.mean(axis=0, keepdims=True)
    var = ((h - mean) ** 2).mean(axis=0, keepdims=True)
    hn = (h - mean) / jnp.sqrt(var + BN_EPS) * gamma.reshape(1, -1) + beta.reshape(1, -1)
    act = jnp.where(hn > 0, hn, LRELU_SLOPE * hn)
    ref = act @ w2 + b2.reshape(1, 1)

    assert score.shape == (batch, 1)
    err = float(jnp.max(jnp.abs(score - ref)))
    assert jnp.allclose(score, ref, atol=2e-3, rtol=2e-3), f"max abs err={err}"

    print("KERNEL_OK")
</pallas_src>

<mosaic_0001>
module attributes {stable_mosaic.version = 11 : i64} {
  func.func @_disc_kernel(%arg0: i32, %arg1: i32, %arg2: memref<16x128xbf16, #tpu.memory_space<vmem>>, %arg3: memref<128x128xbf16, #tpu.memory_space<vmem>>, %arg4: memref<8x128xf32, #tpu.memory_space<vmem>>, %arg5: memref<1x16x1xf32, #tpu.memory_space<vmem>>, %arg6: memref<16x128xf32, #tpu.memory_space<vmem>>) attributes {dimension_semantics = [#tpu.dimension_semantics<parallel>, #tpu.dimension_semantics<arbitrary>], iteration_bounds = array<i64: 1, 1>, scalar_prefetch = 0 : i64, scratch_operands = 1 : i64, tpu.core_type = #tpu.core_type<tc>, window_params = [{pipeline_mode = #tpu.pipeline_mode<synchronous>, transform_indices = @transform_0, window_bounds = array<i64: 16, 128>}, {transform_indices = @transform_1, window_bounds = array<i64: 128, 128>}, {transform_indices = @transform_2, window_bounds = array<i64: 8, 128>}, {transform_indices = @transform_3, window_bounds = array<i64: 1, 16, 1>}]} {
    %c0_i32 = arith.constant 0 : i32
    %0 = arith.cmpi eq, %arg1, %c0_i32 : i32
    %1 = arith.extui %0 : i1 to i32
    %c0_i32_0 = arith.constant 0 : i32
    %2 = arith.cmpi ne, %1, %c0_i32_0 : i32
    scf.if %2 {
      %cst_9 = arith.constant 0.000000e+00 : f32
      %15 = vector.broadcast %cst_9 : f32 to vector<16x128xf32>
      %c0_10 = arith.constant 0 : index
      %c0_11 = arith.constant 0 : index
      %16 = vector.load %arg6[%c0_10, %c0_11] : memref<16x128xf32, #tpu.memory_space<vmem>>, vector<16x128xf32>
      tpu.vector_store %arg6[%c0_10, %c0_11], %15 {strides = array<i32>} : memref<16x128xf32, #tpu.memory_space<vmem>>, vector<16x128xf32>,
    } else {
    }
    %c128_i32 = arith.constant 128 : i32
    %3 = arith.muli %arg1, %c128_i32 : i32
    %4 = tpu.assume_multiple %3, 128 : i32
    %c0 = arith.constant 0 : index
    %5 = arith.index_cast %4 : i32 to index
    %6 = vector.load %arg2[%c0, %5] : memref<16x128xbf16, #tpu.memory_space<vmem>>, vector<16x128xbf16>
    %c0_1 = arith.constant 0 : index
    %c0_2 = arith.constant 0 : index
    %7 = vector.load %arg6[%c0_1, %c0_2] : memref<16x128xf32, #tpu.memory_space<vmem>>, vector<16x128xf32>
    %c0_3 = arith.constant 0 : index
    %c0_4 = arith.constant 0 : index
    %8 = vector.load %arg3[%c0_3, %c0_4] : memref<128x128xbf16, #tpu.memory_space<vmem>>, vector<128x128xbf16>
    %cst = arith.constant dense<0.000000e+00> : vector<16x128xf32>
    %9 = tpu.matmul %6, %8, %cst {dimension_numbers = #tpu.dot_dimension_numbers<[1], [0], [0], [1], [0, 0, 1, 1], [], []>} : vector<16x128xbf16>, vector<128x128xbf16>, vector<16x128xf32> -> vector<16x128xf32>
    %10 = arith.addf %7, %9 : vector<16x128xf32>
    %c0_5 = arith.constant 0 : index
    %c0_6 = arith.constant 0 : index
    %11 = vector.load %arg6[%c0_5, %c0_6] : memref<16x128xf32, #tpu.memory_space<vmem>>, vector<16x128xf32>
    tpu.vector_store %arg6[%c0_5, %c0_6], %10 {strides = array<i32>} : memref<16x128xf32, #tpu.memory_space<vmem>>, vector<16x128xf32>,
    %c0_i32_7 = arith.constant 0 : i32
    %12 = arith.cmpi eq, %arg1, %c0_i32_7 : i32
    %13 = arith.extui %12 : i1 to i32
    %c0_i32_8 = arith.constant 0 : i32
    %14 = arith.cmpi ne, %13, %c0_i32_8 : i32
    scf.if %14 {
      %c0_9 = arith.constant 0 : index
      %c0_10 = arith.constant 0 : index
      %15 = vector.load %arg6[%c0_9, %c0_10] : memref<16x128xf32, #tpu.memory_space<vmem>>, vector<16x128xf32>
      %c0_11 = arith.constant 0 : index
      %c0_12 = arith.constant 0 : index
      %16 = vector.load %arg4[%c0_11, %c0_12] : memref<8x128xf32, #tpu.memory_space<vmem>>, vector<1x128xf32>
      %c1 = arith.constant 1 : index
      %c0_13 = arith.constant 0 : index
      %17 = vector.load %arg4[%c1, %c0_13] : memref<8x128xf32, #tpu.memory_space<vmem>>, vector<1x128xf32>
      %c2 = arith.constant 2 : index
      %c0_14 = arith.constant 0 : index
      %18 = vector.load %arg4[%c2, %c0_14] : memref<8x128xf32, #tpu.memory_space<vmem>>, vector<1x128xf32>
      %cst_15 = arith.constant dense<0.000000e+00> : vector<128xf32>
      %19 = vector.multi_reduction <add>, %15, %cst_15 [0] : vector<16x128xf32> to vector<128xf32>
      %20 = vector.shape_cast %19 : vector<128xf32> to vector<1x128xf32>
      %cst_16 = arith.constant 1.250000e-01 : f32
      %21 = vector.broadcast %cst_16 : f32 to vector<1x128xf32>
      %22 = arith.mulf %20, %21 : vector<1x128xf32>
      %23 = vector.broadcast %22 : vector<1x128xf32> to vector<16x128xf32>
      %24 = arith.subf %15, %23 : vector<16x128xf32>
      %25 = tpu.iota {dimensions = array<i32: 0>} : vector<16x128xi32>
      %c8_i32 = arith.constant 8 : i32
      %26 = vector.broadcast %c8_i32 : i32 to vector<16x128xi32>
      %27 = arith.cmpi slt, %25, %26 : vector<16x128xi32>
      %cst_17 = arith.constant 0.000000e+00 : f32
      %28 = vector.broadcast %cst_17 : f32 to vector<16x128xf32>
      %29 = arith.select %27, %24, %28 : vector<16x128xi1>, vector<16x128xf32>
      %30 = arith.mulf %29, %29 : vector<16x128xf32>
      %cst_18 = arith.constant dense<0.000000e+00> : vector<128xf32>
      %31 = vector.multi_reduction <add>, %30, %cst_18 [0] : vector<16x128xf32> to vector<128xf32>
      %32 = vector.shape_cast %31 : vector<128xf32> to vector<1x128xf32>
      %cst_19 = arith.constant 1.250000e-01 : f32
      %33 = vector.broadcast %cst_19 : f32 to vector<1x128xf32>
      %34 = arith.mulf %32, %33 : vector<1x128xf32>
      %35 = vector.broadcast %22 : vector<1x128xf32> to vector<16x128xf32>
      %36 = arith.subf %15, %35 : vector<16x128xf32>
      %cst_20 = arith.constant 9.99999974E-6 : f32
      %37 = vector.broadcast %cst_20 : f32 to vector<1x128xf32>
      %38 = arith.addf %34, %37 : vector<1x128xf32>
      %39 = math.rsqrt %38 : vector<1x128xf32>
      %40 = vector.broadcast %39 : vector<1x128xf32> to vector<16x128xf32>
      %41 = arith.mulf %36, %40 : vector<16x128xf32>
      %42 = vector.broadcast %16 : vector<1x128xf32> to vector<16x128xf32>
      %43 = arith.mulf %41, %42 : vector<16x128xf32>
      %44 = vector.broadcast %17 : vector<1x128xf32> to vector<16x128xf32>
      %45 = arith.addf %43, %44 : vector<16x128xf32>
      %cst_21 = arith.constant 0.000000e+00 : f32
      %46 = vector.broadcast %cst_21 : f32 to vector<16x128xf32>
      %47 = arith.cmpf ogt, %45, %46 : vector<16x128xf32>
      %cst_22 = arith.constant 1.000000e-01 : f32
      %48 = vector.broadcast %cst_22 : f32 to vector<16x128xf32>
      %49 = arith.mulf %48, %45 : vector<16x128xf32>
      %50 = arith.select %47, %45, %49 : vector<16x128xi1>, vector<16x128xf32>
      %51 = vector.broadcast %18 : vector<1x128xf32> to vector<16x128xf32>
      %52 = arith.mulf %50, %51 : vector<16x128xf32>
      %cst_23 = arith.constant dense<0.000000e+00> : vector<16xf32>
      %53 = vector.multi_reduction <add>, %52, %cst_23 [1] : vector<16x128xf32> to vector<16xf32>
      %54 = vector.shape_cast %53 : vector<16xf32> to vector<16x1xf32>
      %55 = vector.shape_cast %54 : vector<16x1xf32> to vector<1x16x1xf32>
      %c0_24 = arith.constant 0 : index
      %c0_25 = arith.constant 0 : index
      %c0_26 = arith.constant 0 : index
      %56 = vector.load %arg5[%c0_24, %c0_25, %c0_26] : memref<1x16x1xf32, #tpu.memory_space<vmem>>, vector<1x16x1xf32>
      tpu.vector_store %arg5[%c0_24, %c0_25, %c0_26], %55 {strides = array<i32>} : memref<1x16x1xf32, #tpu.memory_space<vmem>>, vector<1x16x1xf32>,
    } else {
    }
    return
  }
  func.func @transform_0(%arg0: i32, %arg1: i32) -> (i32, i32) {
    %c0_i32 = arith.constant 0 : i32
    %c0_i32_0 = arith.constant 0 : i32
    %c0_i32_1 = arith.constant 0 : i32
    return %c0_i32, %c0_i32_0 : i32, i32
  }
  func.func @transform_1(%arg0: i32, %arg1: i32) -> (i32, i32) {
    %c0_i32 = arith.constant 0 : i32
    return %arg1, %arg0 : i32, i32
  }
  func.func @transform_2(%arg0: i32, %arg1: i32) -> (i32, i32) {
    %c0_i32 = arith.constant 0 : i32
    %c0_i32_0 = arith.constant 0 : i32
    return %c0_i32, %arg0 : i32, i32
  }
  func.func @transform_3(%arg0: i32, %arg1: i32) -> (i32, i32, i32) {
    %c0_i32 = arith.constant 0 : i32
    %c0_i32_0 = arith.constant 0 : i32
    %c0_i32_1 = arith.constant 0 : i32
    return %arg0, %c0_i32, %c0_i32_0 : i32, i32, i32
  }
}

</mosaic_0001>

<llo_original>
// kernel: discriminator_forward.1
$region0: #{discriminator_forward.1}
  #allocation0 [shape = 'u32[]', space=smem, size = 0x4, offset = 0x4, fixed_abs, tag = 'smem constant byte address 0x4 - core index']
  #allocation1 [shape = 'u32[144,128]{1,0:T(1,128)}', space=vmem, size = 0x12000, scoped, tag = 'internal scratch']
  #allocation2 [shape = 'f32[16,128]{1,0:T(8,128)}', space=vmem, size = 0x2000, scoped, tag = 'scratch operand']
  %s0 = inlined_call_operand.vmem [shape: bf16[16,128], index: 0, kind: input, shape index: {}]
  %s1 = inlined_call_operand.hbm [shape: bf16[128,128], index: 1, kind: input, shape index: {}]
  %s2 = inlined_call_operand.vmem [shape: f32[8,128], index: 2, kind: input, shape index: {}]
  %s3 = inlined_call_operand.vmem [shape: f32[1,16,1], index: 3, kind: output, shape index: {}]
  %s4 = sld [smem:[#allocation0]]
  $region34: #{discriminator_forward.1} parent=0
    _
  %s6 = ssub.s32 1, %s4
  %s7 = scalar_select 0, %s6, %s4
  $region1: #{discriminator_forward.1} parent=0
    #allocation3 [shape = 'u8[32768]{0}', space=vmem, size = 0x8000, scoped, tag = 'input window, operand 1, single buffered']
    #allocation4 [shape = 's32[1]{0}', space=sflag, size = 0x4, scoped, tag = 'scoped memory for discriminator_forward.1']
    %8 = vsyncpa [#allocation4], 0
    // Predicated region
    $region2: #{discriminator_forward.1} parent=1 // pred_check
      _
    $region3: #{discriminator_forward.1} parent=1 // pred_check_branch
      %10 = sbr.rel (0) target = $region5
    $region4: #{discriminator_forward.1} parent=1 // pred_region
      _
    $region5: #{discriminator_forward.1} parent=1 // pred_fallthru
      _
    // Predicated region
    $region6: #{discriminator_forward.1} parent=1 // pred_check
      _
    $region7: #{discriminator_forward.1} parent=1 // pred_check_branch
      %12 = sbr.rel (0) target = $region9
    $region8: #{discriminator_forward.1} parent=1 // pred_region
      %s14 = ssub.s32 1024, 1024
      %15 = vsyncadd [#allocation4], %s14
      %s16 = sshll.u32 [#allocation3], 4
      %s17 = int_to_ptr.vmem [resolvable:$true] %s16
      %22 = dma.hbm_to_vmem [thread:$0]  %s1, 1024, %s17, [#allocation4], 64, 64, 4
    $region9: #{discriminator_forward.1} parent=1 // pred_fallthru
      _
    // Predicated region
    $region10: #{discriminator_forward.1} parent=1 // pred_check
      _
    $region11: #{discriminator_forward.1} parent=1 // pred_check_branch
      %24 = sbr.rel (0) target = $region13
    $region12: #{discriminator_forward.1} parent=1 // pred_region
      _
    $region13: #{discriminator_forward.1} parent=1 // pred_fallthru
      _
    // Predicated region
    $region14: #{discriminator_forward.1} parent=1 // pred_check
      _
    $region15: #{discriminator_forward.1} parent=1 // pred_check_branch
      %26 = sbr.rel (0) target = $region17
    $region16: #{discriminator_forward.1} parent=1 // pred_region
      %27 = dma.done [#allocation4], 1024
    $region17: #{discriminator_forward.1} parent=1 // pred_fallthru
      _
    %p29 = scmp.eq.s32.totalorder 0, 0
    // Predicated region
    $region18: #{discriminator_forward.1} parent=1 // pred_check
      %p30 = pneg %p29
    $region19: #{discriminator_forward.1} parent=1 // pred_check_branch
      %32 = sbr.rel (%p30) target = $region21
    $region20: #{discriminator_forward.1} parent=1 // pred_region
      %33 = vst [vmem:[#allocation2] sm:$0xff] 0.0
      %34 = vst [vmem:[#allocation2 + $0x8] sm:$0xff] 0.0
    $region21: #{discriminator_forward.1} parent=1 // pred_fallthru
      _
    %s35 = smul.u32 0, 128
    %s36 = sshra.s32 %s35, 7
    %s37 = sand.u32 %s35, 127
    %s38 = smul.addr %s36, 4
    %s39 = scalar_lea.vmem %s0, %s38
    %v40 = vld [vmem:[%s39] sm:$0xf]
    %v41 = vld [vmem:[%s39 + $0x4] sm:$0xf]
    %v42 = vld [vmem:[#allocation2] sm:$0xff]
    %v43 = vld [vmem:[#allocation2 + $0x8] sm:$0xff]
    %v44 = vld [vmem:[#allocation3] sm:$0xf]
    %v45 = vld [vmem:[#allocation3 + $0x4] sm:$0xf]
    %v46 = vld [vmem:[#allocation3 + $0x8] sm:$0xf]
    %v47 = vld [vmem:[#allocation3 + $0xc] sm:$0xf]
    %v48 = vld [vmem:[#allocation3 + $0x10] sm:$0xf]
    %v49 = vld [vmem:[#allocation3 + $0x14] sm:$0xf]
    %v50 = vld [vmem:[#allocation3 + $0x18] sm:$0xf]
    %v51 = vld [vmem:[#allocation3 + $0x1c] sm:$0xf]
    %v52 = vld [vmem:[#allocation3 + $0x20] sm:$0xf]
    %v53 = vld [vmem:[#allocation3 + $0x24] sm:$0xf]
    %v54 = vld [vmem:[#allocation3 + $0x28] sm:$0xf]
    %v55 = vld [vmem:[#allocation3 + $0x2c] sm:$0xf]
    %v56 = vld [vmem:[#allocation3 + $0x30] sm:$0xf]
    %v57 = vld [vmem:[#allocation3 + $0x34] sm:$0xf]
    %v58 = vld [vmem:[#allocation3 + $0x38] sm:$0xf]
    %v59 = vld [vmem:[#allocation3 + $0x3c] sm:$0xf]
    %v62 = vunpack.c.l.b16 %v40
    %v63 = vunpack.c.l.b16 %v41
    %v64 = vpack.c.b16 %v63, %v62
    %v82 = vunpack.c.l.b16 %v44
    %v83 = vunpack.c.l.b16 %v45
    %v84 = vunpack.c.l.b16 %v46
    %v85 = vunpack.c.l.b16 %v47
    %v86 = vunpack.c.l.b16 %v48
    %v87 = vunpack.c.l.b16 %v49
    %v88 = vunpack.c.l.b16 %v50
    %v89 = vunpack.c.l.b16 %v51
    %v90 = vunpack.c.l.b16 %v52
    %v91 = vunpack.c.l.b16 %v53
    %v92 = vunpack.c.l.b16 %v54
    %v93 = vunpack.c.l.b16 %v55
    %v94 = vunpack.c.l.b16 %v56
    %v95 = vunpack.c.l.b16 %v57
    %v96 = vunpack.c.l.b16 %v58
    %v97 = vunpack.c.l.b16 %v59
    %v98 = vpack.c.b16 %v83, %v82
    %v99 = vpack.c.b16 %v85, %v84
    %v100 = vpack.c.b16 %v87, %v86
    %v101 = vpack.c.b16 %v89, %v88
    %v102 = vpack.c.b16 %v91, %v90
    %v103 = vpack.c.b16 %v93, %v92
    %v104 = vpack.c.b16 %v95, %v94
    %v105 = vpack.c.b16 %v97, %v96
    %114 = vmatprep.subr.bf16.mxu0 0
    %115 = vmatpush1.bf16.msra.mxu0 %v98
    %116 = vmatprep.subr.bf16.mxu0 0
    %117 = vmatpush1.bf16.msra.mxu0 %v99
    %118 = vmatprep.subr.bf16.mxu0 0
    %119 = vmatpush1.bf16.msra.mxu0 %v100
    %120 = vmatprep.subr.bf16.mxu0 0
    %121 = vmatpush1.bf16.msra.mxu0 %v101
    %122 = vmatprep.subr.bf16.mxu0 0
    %123 = vmatpush1.bf16.msra.mxu0 %v102
    %124 = vmatprep.subr.bf16.mxu0 0
    %125 = vmatpush1.bf16.msra.mxu0 %v103
    %126 = vmatprep.subr.bf16.mxu0 0
    %127 = vmatpush1.bf16.msra.mxu0 %v104
    %128 = vmatprep.subr.bf16.mxu0 0
    %129 = vmatpush1.bf16.msra.mxu0 %v105
    %130 = vmatprep.subr.bf16.mxu0 0
    %131 = vmatpush1.bf16.msra.mxu0 0
    %132 = vmatprep.subr.bf16.mxu0 0
    %133 = vmatpush1.bf16.msra.mxu0 0
    %134 = vmatprep.subr.bf16.mxu0 0
    %135 = vmatpush1.bf16.msra.mxu0 0
    %136 = vmatprep.subr.bf16.mxu0 0
    %137 = vmatpush1.bf16.msra.mxu0 0
    %138 = vmatprep.subr.bf16.mxu0 0
    %139 = vmatpush1.bf16.msra.mxu0 0
    %140 = vmatprep.subr.bf16.mxu0 0
    %141 = vmatpush1.bf16.msra.mxu0 0
    %142 = vmatprep.subr.bf16.mxu0 0
    %143 = vmatpush1.bf16.msra.mxu0 0
    %144 = vmatprep.subr.bf16.mxu0 0
    %145 = vmatpush1.bf16.msra.mxu0 0
    %146 = vmatprep.mubr.bf16.mxu0 0
    %147 = vmatmul.mubr.bf16.gmra.mrb[0].mxu0 %v64
    %v148 = vpop.f32.mrb[0].mxu0
    %v149 = vadd.f32 0.0, %v148
    %v150 = vpop.f32.mrb[0].mxu0
    %v151 = vpop.f32.mrb[0].mxu0
    %v152 = vadd.f32 0.0, %v151
    %v153 = vpop.f32.mrb[0].mxu0
    %154 = vdwg.mxu0
    %v155 = vadd.f32 %v42, %v149
    %v156 = vadd.f32 %v43, %v152
    %157 = vst [vmem:[#allocation2] sm:$0xff] %v155
    %158 = vst [vmem:[#allocation2 + $0x8] sm:$0xff] %v156
    // Predicated region
    $region22: #{discriminator_forward.1} parent=1 // pred_check
      %p159 = pneg %p29
    $region23: #{discriminator_forward.1} parent=1 // pred_check_branch
      %161 = sbr.rel (%p159) target = $region25
    $region24: #{discriminator_forward.1} parent=1 // pred_region
      %v162 = vld [vmem:[#allocation2] sm:$0xff]
      %v163 = vld [vmem:[#allocation2 + $0x8] sm:$0xff]
      %v164 = vld [vmem:[%s2] sm:$0x1]
      %v165 = vld [vmem:[%s2 + $0x1] sm:$0x1]
      %v166 = vld [vmem:[%s2 + $0x2] sm:$0x1]
      %v167 = vadd.f32 %v162, %v163
      %v168 = vrot.slane %v167, 4
      %v169 = vadd.f32 %v167, %v168
      %v170 = vrot.slane %v169, 2
      %v171 = vadd.f32 %v169, %v170
      %v172 = vrot.slane %v171, 1
      %v173 = vadd.f32 %v171, %v172
      %v174 = vmul.f32 %v173, 0.125
      %v175 = vsub.f32 %v162, %v174
      %v176 = vsub.f32 %v163, %v174
      %v177 = vlaneseq
      %v178 = vshrl.u32 %v177, 7
      %v179 = vadd.s32 %v178, 8
      %vm180 = vcmp.lt.s32.totalorder %v178, 8
      %vm181 = vcmp.lt.s32.totalorder %v179, 8
      %v182 = vsel %vm180, %v175, 0.0
      %v183 = vsel %vm181, %v176, 0.0
      %v184 = vmul.f32 %v182, %v182
      %v185 = vmul.f32 %v183, %v183
      %v186 = vadd.f32 %v184, %v185
      %v187 = vrot.slane %v186, 4
      %v188 = vadd.f32 %v186, %v187
      %v189 = vrot.slane %v188, 2
      %v190 = vadd.f32 %v188, %v189
      %v191 = vrot.slane %v190, 1
      %v192 = vadd.f32 %v190, %v191
      %v193 = vmul.f32 %v192, 0.125
      %v194 = vadd.f32 %v193, 1e-05
      %v195 = vrsqrt.pop %v194
      %v196 = vmul.f32 %v175, %v195
      %v197 = vmul.f32 %v176, %v195
      %v198 = vlaneseq
      %v199 = vshrl.u32 %v198, 7
      %v200 = vsub.s32 0, %v199
      %v201 = vrot.slane %v164, %v200
      %v202 = vmul.f32 %v196, %v201
      %v203 = vmul.f32 %v197, %v201
      %v204 = vlaneseq
      %v205 = vshrl.u32 %v204, 7
      %v206 = vsub.s32 0, %v205
      %v207 = vrot.slane %v165, %v206
      %v208 = vadd.f32 %v202, %v207
      %v209 = vadd.f32 %v203, %v207
      %vm210 = vcmp.gt.f32.partialorder %v208, 0.0
      %vm211 = vcmp.gt.f32.partialorder %v209, 0.0
      %v212 = vmul.f32 %v208, 0.1
      %v213 = vmul.f32 %v209, 0.1
      %v214 = vsel %vm210, %v208, %v212
      %v215 = vsel %vm211, %v209, %v213
      %v216 = vlaneseq
      %v217 = vshrl.u32 %v216, 7
      %v218 = vsub.s32 0, %v217
      %v219 = vrot.slane %v166, %v218
      %v220 = vmul.f32 %v214, %v219
      %v221 = vmul.f32 %v215, %v219
      %222 = vadd.xlane.f32.xlu0 %v220
      %v223 = vpop.xlane.xlu0 %222
      %224 = vadd.xlane.f32.xlu0 %v221
      %v225 = vpop.xlane.xlu0 %224
      %vm226 = vcmask 7168
      %227 = vst.msk [vmem:[%s3] sm:$0xff] %vm226, %v223
      %228 = vst.msk [vmem:[%s3 + $0x8] sm:$0xff] %vm226, %v225
    $region25: #{discriminator_forward.1} parent=1 // pred_fallthru
      _
    // Predicated region
    $region26: #{discriminator_forward.1} parent=1 // pred_check
      _
    $region27: #{discriminator_forward.1} parent=1 // pred_check_branch
      %230 = sbr.rel (0) target = $region29
    $region28: #{discriminator_forward.1} parent=1 // pred_region
      _
    $region29: #{discriminator_forward.1} parent=1 // pred_fallthru
      _
    // Predicated region
    $region30: #{discriminator_forward.1} parent=1 // pred_check
      _
    $region31: #{discriminator_forward.1} parent=1 // pred_check_branch
      %232 = sbr.rel (0) target = $region33
    $region32: #{discriminator_forward.1} parent=1 // pred_region
      _
    $region33: #{discriminator_forward.1} parent=1 // pred_fallthru
      _
    %233 = vsyncpa [#allocation4], 1

</llo_original>
